<compile_context>
chip_gen: v6e
topology: v6e:2x2x1
jax: 0.10.0
libtpu: 0.0.40
codegen_flags: <defaults>
</compile_context>

<pallas_src>
import functools

import jax
import jax.numpy as jnp
from jax import lax
from jax.experimental import pallas as pl
from jax.experimental.pallas import tpu as pltpu


# --------------------------------------------------------------------------
# Fused RTP-MLP kernel: fc1 (column-parallel) -> ReLU -> fc2 (row-parallel).
# All operands live fully in VMEM; both rotations fold into single MXU ops.
# --------------------------------------------------------------------------
def _rtp_mlp_fused_kernel(x_ref, w1_ref, b1_ref, w2_ref, b2_ref, o_ref):
    # x_ref:  (Bp, IN)          torch-layout weights (out, in):
    # w1_ref: (HID, IN)         b1_ref: (1, HID)
    # w2_ref: (OUT_pad, HID)    b2_ref: (1, OUT_pad)   o_ref: (Bp, OUT_pad)
    x = x_ref[...]

    # --- fc1: column-parallel rotation -----------------------------------
    # torch.cat of the per-shard outputs along dim=-1 is bit-exact equal to
    # one x @ W1ᵀ matmul; contraction expressed via dimension_numbers so no
    # wrapper-side transpose copy is needed.
    h = lax.dot_general(x, w1_ref[...],
                        dimension_numbers=(((1,), (1,)), ((), ())),
                        preferred_element_type=jnp.float32)
    h = jnp.maximum(h + b1_ref[...], 0.0)          # bias + ReLU (f32, VPU)

    # --- fc2: row-parallel rotation --------------------------------------
    # The sum of per-shard partial products over the (rank - i) % world_size
    # visiting order equals the full K=HID contraction; one MXU push instead
    # of world_size K=16 pushes + (world_size-1) VALU adds.  Full bias added
    # once (equivalent to bias/world_size per step up to fp rounding).
    y = lax.dot_general(h, w2_ref[...],
                        dimension_numbers=(((1,), (1,)), ((), ())),
                        preferred_element_type=jnp.float32)
    o_ref[...] = (y + b2_ref[...]).astype(o_ref.dtype)


# --------------------------------------------------------------------------
# RotatedTensorParallel(MLP).forward — single pallas_call wrapper.
# --------------------------------------------------------------------------
@functools.partial(jax.jit, static_argnames=("world_size", "rank"))
def rtp_mlp_forward(x, w1, b1, w2, b2, *, world_size, rank):
    """Forward of RotatedTensorParallel(Linear(IN,HID) -> ReLU -> Linear(HID,OUT)).

    w1: (HID, IN) torch nn.Linear weight layout; w2: (OUT, HID).
    `rank` only affects the fp summation order of the torch rotation, which
    folds away once the rotations collapse to full contractions.
    """
    B, IN = x.shape
    HID = w1.shape[0]
    OUT = w2.shape[0]
    # fc1 column-parallel requires HID % W == 0; fc2 row-parallel requires HID % W == 0.
    assert HID % world_size == 0
    del rank  # rotation order is numerically folded into single matmuls

    SUBLANE, LANE = 8, 128
    B_pad = max(SUBLANE, pl.cdiv(B, SUBLANE) * SUBLANE)      # f32 sublane multiple
    OUT_pad = pl.cdiv(OUT, LANE) * LANE                      # lane-dense output slab

    # Zero-pad: batch rows of x, output rows of w2, and b2 columns.  Biases
    # reshaped to (1, N) for broadcast.  No weight transposes.
    x_p = jnp.pad(x, ((0, B_pad - B), (0, 0)))
    w2_p = jnp.pad(w2, ((0, OUT_pad - OUT), (0, 0)))
    b1r = b1.reshape(1, HID)
    b2r = jnp.pad(b2, (0, OUT_pad - OUT)).reshape(1, OUT_pad)

    itemsize = 4  # f32 at toy size; bf16 at scale (see NOTE above)
    cost = pl.CostEstimate(
        flops=2 * B_pad * (IN * HID + HID * OUT_pad),
        transcendentals=0,
        bytes_accessed=itemsize * (x_p.size + w1.size + b1r.size
                                   + w2_p.size + b2r.size + B_pad * OUT_pad),
    )

    vmem = pl.BlockSpec(memory_space=pltpu.MemorySpace.VMEM)
    # No grid: one kernel invocation, whole problem (~50 KB) resident in VMEM.
    y_pad = pl.pallas_call(
        _rtp_mlp_fused_kernel,
        out_shape=jax.ShapeDtypeStruct((B_pad, OUT_pad), jnp.float32),
        in_specs=[vmem, vmem, vmem, vmem, vmem],
        out_specs=vmem,
        cost_estimate=cost,
    )(x_p, w1, b1r, w2_p, b2r)

    return y_pad[:B, :OUT]


if __name__ == "__main__":
    B, IN, HID, OUT = 4, 32, 64, 30
    WORLD_SIZE, RANK = 4, 0

    key = jax.random.PRNGKey(0)
    k1, k2, k3, k4, k5 = jax.random.split(key, 5)
    x = jax.random.normal(k1, (B, IN), jnp.float32)
    w1 = jax.random.normal(k2, (HID, IN), jnp.float32) * 0.1   # nn.Linear(IN, HID).weight
    b1 = jax.random.normal(k3, (HID,), jnp.float32) * 0.1
    w2 = jax.random.normal(k4, (OUT, HID), jnp.float32) * 0.1  # nn.Linear(HID, OUT).weight
    b2 = jax.random.normal(k5, (OUT,), jnp.float32) * 0.1

    y = rtp_mlp_forward(x, w1, b1, w2, b2, world_size=WORLD_SIZE, rank=RANK)
    y = jax.block_until_ready(y)

    # Reference: un-sharded module forward (RTP is numerically identical).
    y_ref = jnp.maximum(x @ w1.T + b1, 0.0) @ w2.T + b2
    assert y.shape == (B, OUT)
    assert jnp.allclose(y, y_ref, rtol=1e-4, atol=1e-4), "RTP kernel mismatch"

    print("KERNEL_OK")
</pallas_src>

<mosaic_0001>
module attributes {stable_mosaic.version = 11 : i64} {
  func.func @_rtp_mlp_fused_kernel(%arg0: memref<8x32xf32, #tpu.memory_space<vmem>>, %arg1: memref<64x32xf32, #tpu.memory_space<vmem>>, %arg2: memref<1x64xf32, #tpu.memory_space<vmem>>, %arg3: memref<128x64xf32, #tpu.memory_space<vmem>>, %arg4: memref<1x128xf32, #tpu.memory_space<vmem>>, %arg5: memref<8x128xf32, #tpu.memory_space<vmem>>) attributes {dimension_semantics = [], scalar_prefetch = 0 : i64, scratch_operands = 0 : i64, tpu.core_type = #tpu.core_type<tc>} {
    %c0 = arith.constant 0 : index
    %c0_0 = arith.constant 0 : index
    %0 = vector.load %arg0[%c0, %c0_0] : memref<8x32xf32, #tpu.memory_space<vmem>>, vector<8x32xf32>
    %c0_1 = arith.constant 0 : index
    %c0_2 = arith.constant 0 : index
    %1 = vector.load %arg1[%c0_1, %c0_2] : memref<64x32xf32, #tpu.memory_space<vmem>>, vector<64x32xf32>
    %cst = arith.constant dense<0.000000e+00> : vector<8x64xf32>
    %2 = tpu.matmul %0, %1, %cst {dimension_numbers = #tpu.dot_dimension_numbers<[1], [1], [0], [0], [0, 0, 1, 0], [], []>} : vector<8x32xf32>, vector<64x32xf32>, vector<8x64xf32> -> vector<8x64xf32>
    %c0_3 = arith.constant 0 : index
    %c0_4 = arith.constant 0 : index
    %3 = vector.load %arg2[%c0_3, %c0_4] : memref<1x64xf32, #tpu.memory_space<vmem>>, vector<1x64xf32>
    %4 = vector.broadcast %3 : vector<1x64xf32> to vector<8x64xf32>
    %5 = arith.addf %2, %4 : vector<8x64xf32>
    %cst_5 = arith.constant 0.000000e+00 : f32
    %6 = vector.broadcast %cst_5 : f32 to vector<8x64xf32>
    %7 = arith.maximumf %5, %6 : vector<8x64xf32>
    %c0_6 = arith.constant 0 : index
    %c0_7 = arith.constant 0 : index
    %8 = vector.load %arg3[%c0_6, %c0_7] : memref<128x64xf32, #tpu.memory_space<vmem>>, vector<128x64xf32>
    %cst_8 = arith.constant dense<0.000000e+00> : vector<8x128xf32>
    %9 = tpu.matmul %7, %8, %cst_8 {dimension_numbers = #tpu.dot_dimension_numbers<[1], [1], [0], [0], [0, 0, 1, 0], [], []>} : vector<8x64xf32>, vector<128x64xf32>, vector<8x128xf32> -> vector<8x128xf32>
    %c0_9 = arith.constant 0 : index
    %c0_10 = arith.constant 0 : index
    %10 = vector.load %arg4[%c0_9, %c0_10] : memref<1x128xf32, #tpu.memory_space<vmem>>, vector<1x128xf32>
    %11 = vector.broadcast %10 : vector<1x128xf32> to vector<8x128xf32>
    %12 = arith.addf %9, %11 : vector<8x128xf32>
    %c0_11 = arith.constant 0 : index
    %c0_12 = arith.constant 0 : index
    %13 = vector.load %arg5[%c0_11, %c0_12] : memref<8x128xf32, #tpu.memory_space<vmem>>, vector<8x128xf32>
    tpu.vector_store %arg5[%c0_11, %c0_12], %12 {strides = array<i32>} : memref<8x128xf32, #tpu.memory_space<vmem>>, vector<8x128xf32>,
    return
  }
}

</mosaic_0001>

<llo_original>
// kernel: rtp_mlp_forward.1
$region0: #{rtp_mlp_forward.1}
  #allocation0 [shape = 'u32[]', space=smem, size = 0x4, offset = 0x4, fixed_abs, tag = 'smem constant byte address 0x4 - core index']
  #allocation1 [shape = 'u32[144,128]{1,0:T(1,128)}', space=vmem, size = 0x12000, scoped, tag = 'internal scratch']
  %s0 = inlined_call_operand.vmem [shape: f32[8,32], index: 0, kind: input, shape index: {}]
  %s1 = inlined_call_operand.vmem [shape: f32[64,32], index: 1, kind: input, shape index: {}]
  %s2 = inlined_call_operand.vmem [shape: f32[1,64], index: 2, kind: input, shape index: {}]
  %s3 = inlined_call_operand.vmem [shape: f32[128,64], index: 3, kind: input, shape index: {}]
  %s4 = inlined_call_operand.vmem [shape: f32[1,128], index: 4, kind: input, shape index: {}]
  %s5 = inlined_call_operand.vmem [shape: f32[8,128], index: 5, kind: output, shape index: {}]
  %s6 = sld [smem:[#allocation0]]
  $region30: #{rtp_mlp_forward.1} parent=0
    _
  %s8 = ssub.s32 1, %s6
  %s9 = scalar_select 0, %s8, %s6
  // Predicated region
  $region2: #{rtp_mlp_forward.1} parent=0 // pred_check
    _
  $region3: #{rtp_mlp_forward.1} parent=0 // pred_check_branch
    %11 = sbr.rel (0) target = $region5
  $region4: #{rtp_mlp_forward.1} parent=0 // pred_region
    _
  $region5: #{rtp_mlp_forward.1} parent=0 // pred_fallthru
    _
  // Predicated region
  $region6: #{rtp_mlp_forward.1} parent=0 // pred_check
    _
  $region7: #{rtp_mlp_forward.1} parent=0 // pred_check_branch
    %13 = sbr.rel (0) target = $region9
  $region8: #{rtp_mlp_forward.1} parent=0 // pred_region
    _
  $region9: #{rtp_mlp_forward.1} parent=0 // pred_fallthru
    _
  // Predicated region
  $region10: #{rtp_mlp_forward.1} parent=0 // pred_check
    _
  $region11: #{rtp_mlp_forward.1} parent=0 // pred_check_branch
    %15 = sbr.rel (0) target = $region13
  $region12: #{rtp_mlp_forward.1} parent=0 // pred_region
    _
  $region13: #{rtp_mlp_forward.1} parent=0 // pred_fallthru
    _
  // Predicated region
  $region14: #{rtp_mlp_forward.1} parent=0 // pred_check
    _
  $region15: #{rtp_mlp_forward.1} parent=0 // pred_check_branch
    %17 = sbr.rel (0) target = $region17
  $region16: #{rtp_mlp_forward.1} parent=0 // pred_region
    _
  $region17: #{rtp_mlp_forward.1} parent=0 // pred_fallthru
    _
  // Predicated region
  $region18: #{rtp_mlp_forward.1} parent=0 // pred_check
    _
  $region19: #{rtp_mlp_forward.1} parent=0 // pred_check_branch
    %19 = sbr.rel (0) target = $region21
  $region20: #{rtp_mlp_forward.1} parent=0 // pred_region
    _
  $region21: #{rtp_mlp_forward.1} parent=0 // pred_fallthru
    _
  %v20 = vld [vmem:[%s0] sm:$0xff]
  %v21 = vld [vmem:[%s1] sm:$0xff]
  %v22 = vld [vmem:[%s1 + $0x8] sm:$0xff]
  %v23 = vld [vmem:[%s1 + $0x10] sm:$0xff]
  %v24 = vld [vmem:[%s1 + $0x18] sm:$0xff]
  %v25 = vld [vmem:[%s1 + $0x20] sm:$0xff]
  %v26 = vld [vmem:[%s1 + $0x28] sm:$0xff]
  %v27 = vld [vmem:[%s1 + $0x30] sm:$0xff]
  %v28 = vld [vmem:[%s1 + $0x38] sm:$0xff]
  %v29 = vld [vmem:[%s2] sm:$0x1]
  %v31 = vlaneseq
  %v32 = vshrl.u32 %v31, 7
  %v33 = vsub.s32 0, %v32
  %v34 = vrot.slane %v29, %v33
  %vm36 = vcmask 261120
  %v38 = vsel %vm36, %v20, 0
  %v41 = vsel %vm36, %v21, 0
  %v44 = vsel %vm36, %v22, 0
  %v47 = vsel %vm36, %v23, 0
  %v50 = vsel %vm36, %v24, 0
  %v53 = vsel %vm36, %v25, 0
  %v56 = vsel %vm36, %v26, 0
  %v59 = vsel %vm36, %v27, 0
  %v62 = vsel %vm36, %v28, 0
  %64 = vmatprep.subr.mxu0 0.0
  %65 = vmatpush1.xpose.msra.mxu0 0.0
  %66 = vmatprep.subr.mxu0 0.0
  %67 = vmatpush1.xpose.msra.mxu0 0.0
  %68 = vmatprep.subr.mxu0 0.0
  %69 = vmatpush1.xpose.msra.mxu0 0.0
  %70 = vmatprep.subr.mxu0 0.0
  %71 = vmatpush1.xpose.msra.mxu0 0.0
  %72 = vmatprep.subr.mxu0 0.0
  %73 = vmatpush1.xpose.msra.mxu0 0.0
  %74 = vmatprep.subr.mxu0 0.0
  %75 = vmatpush1.xpose.msra.mxu0 0.0
  %76 = vmatprep.subr.mxu0 0.0
  %77 = vmatpush1.xpose.msra.mxu0 0.0
  %78 = vmatprep.subr.mxu0 0.0
  %79 = vmatpush1.xpose.msra.mxu0 0.0
  %80 = vmatprep.subr.mxu0 0.0
  %81 = vmatpush1.xpose.msra.mxu0 %v62
  %82 = vmatprep.subr.mxu0 0.0
  %83 = vmatpush1.xpose.msra.mxu0 %v59
  %84 = vmatprep.subr.mxu0 0.0
  %85 = vmatpush1.xpose.msra.mxu0 %v56
  %86 = vmatprep.subr.mxu0 0.0
  %87 = vmatpush1.xpose.msra.mxu0 %v53
  %88 = vmatprep.subr.mxu0 0.0
  %89 = vmatpush1.xpose.msra.mxu0 %v50
  %90 = vmatprep.subr.mxu0 0.0
  %91 = vmatpush1.xpose.msra.mxu0 %v47
  %92 = vmatprep.subr.mxu0 0.0
  %93 = vmatpush1.xpose.msra.mxu0 %v44
  %94 = vmatprep.subr.mxu0 0.0
  %95 = vmatpush1.xpose.msra.mxu0 %v41
  %96 = vmatprep.subr.mxu0 0.0
  %97 = vmatpush2.xpose.msra.mxu0 0.0
  %98 = vmatprep.subr.mxu0 0.0
  %99 = vmatpush2.xpose.msra.mxu0 0.0
  %100 = vmatprep.subr.mxu0 0.0
  %101 = vmatpush2.xpose.msra.mxu0 0.0
  %102 = vmatprep.subr.mxu0 0.0
  %103 = vmatpush2.xpose.msra.mxu0 0.0
  %104 = vmatprep.subr.mxu0 0.0
  %105 = vmatpush2.xpose.msra.mxu0 0.0
  %106 = vmatprep.subr.mxu0 0.0
  %107 = vmatpush2.xpose.msra.mxu0 0.0
  %108 = vmatprep.subr.mxu0 0.0
  %109 = vmatpush2.xpose.msra.mxu0 0.0
  %110 = vmatprep.subr.mxu0 0.0
  %111 = vmatpush2.xpose.msra.mxu0 0.0
  %112 = vmatprep.subr.mxu0 0.0
  %113 = vmatpush2.xpose.msra.mxu0 0.0
  %114 = vmatprep.subr.mxu0 0.0
  %115 = vmatpush2.xpose.msra.mxu0 0.0
  %116 = vmatprep.subr.mxu0 0.0
  %117 = vmatpush2.xpose.msra.mxu0 0.0
  %118 = vmatprep.subr.mxu0 0.0
  %119 = vmatpush2.xpose.msra.mxu0 0.0
  %120 = vmatprep.subr.mxu0 0.0
  %121 = vmatpush2.xpose.msra.mxu0 0.0
  %122 = vmatprep.subr.mxu0 0.0
  %123 = vmatpush2.xpose.msra.mxu0 0.0
  %124 = vmatprep.subr.mxu0 0.0
  %125 = vmatpush2.xpose.msra.mxu0 0.0
  %126 = vmatprep.subr.mxu0 0.0
  %127 = vmatpush2.xpose.msra.mxu0 0.0
  %128 = vmatprep.mubr.f32.mxu0 0.0
  %129 = vmatmul.mubr.f32.gmra.mxu0 %v38
  %v130 = vpop.f32.mrf.mxu0
  %v131 = vadd.f32 %v34, %v130
  %v132 = vpop.f32.mrf.mxu0
  %133 = vdwg.mxu0
  %v134 = vmax.f32 %v131, 0.0
  %v135 = vld [vmem:[%s3] sm:$0xff]
  %v136 = vld [vmem:[%s3 + $0x8] sm:$0xff]
  %v137 = vld [vmem:[%s3 + $0x10] sm:$0xff]
  %v138 = vld [vmem:[%s3 + $0x18] sm:$0xff]
  %v139 = vld [vmem:[%s3 + $0x20] sm:$0xff]
  %v140 = vld [vmem:[%s3 + $0x28] sm:$0xff]
  %v141 = vld [vmem:[%s3 + $0x30] sm:$0xff]
  %v142 = vld [vmem:[%s3 + $0x38] sm:$0xff]
  %v143 = vld [vmem:[%s3 + $0x40] sm:$0xff]
  %v144 = vld [vmem:[%s3 + $0x48] sm:$0xff]
  %v145 = vld [vmem:[%s3 + $0x50] sm:$0xff]
  %v146 = vld [vmem:[%s3 + $0x58] sm:$0xff]
  %v147 = vld [vmem:[%s3 + $0x60] sm:$0xff]
  %v148 = vld [vmem:[%s3 + $0x68] sm:$0xff]
  %v149 = vld [vmem:[%s3 + $0x70] sm:$0xff]
  %v150 = vld [vmem:[%s3 + $0x78] sm:$0xff]
  %v151 = vld [vmem:[%s4] sm:$0x1]
  %v153 = vlaneseq
  %v154 = vshrl.u32 %v153, 7
  %v155 = vsub.s32 0, %v154
  %v156 = vrot.slane %v151, %v155
  %vm158 = vcmask 523264
  %v160 = vsel %vm158, %v134, 0
  %v163 = vsel %vm158, %v135, 0
  %v166 = vsel %vm158, %v136, 0
  %v169 = vsel %vm158, %v137, 0
  %v172 = vsel %vm158, %v138, 0
  %v175 = vsel %vm158, %v139, 0
  %v178 = vsel %vm158, %v140, 0
  %v181 = vsel %vm158, %v141, 0
  %v184 = vsel %vm158, %v142, 0
  %v187 = vsel %vm158, %v143, 0
  %v190 = vsel %vm158, %v144, 0
  %v193 = vsel %vm158, %v145, 0
  %v196 = vsel %vm158, %v146, 0
  %v199 = vsel %vm158, %v147, 0
  %v202 = vsel %vm158, %v148, 0
  %v205 = vsel %vm158, %v149, 0
  %v208 = vsel %vm158, %v150, 0
  %210 = vmatprep.subr.mxu0 0.0
  %211 = vmatpush1.xpose.msra.mxu0 %v208
  %212 = vmatprep.subr.mxu0 0.0
  %213 = vmatpush1.xpose.msra.mxu0 %v205
  %214 = vmatprep.subr.mxu0 0.0
  %215 = vmatpush1.xpose.msra.mxu0 %v202
  %216 = vmatprep.subr.mxu0 0.0
  %217 = vmatpush1.xpose.msra.mxu0 %v199
  %218 = vmatprep.subr.mxu0 0.0
  %219 = vmatpush1.xpose.msra.mxu0 %v196
  %220 = vmatprep.subr.mxu0 0.0
  %221 = vmatpush1.xpose.msra.mxu0 %v193
  %222 = vmatprep.subr.mxu0 0.0
  %223 = vmatpush1.xpose.msra.mxu0 %v190
  %224 = vmatprep.subr.mxu0 0.0
  %225 = vmatpush1.xpose.msra.mxu0 %v187
  %226 = vmatprep.subr.mxu0 0.0
  %227 = vmatpush1.xpose.msra.mxu0 %v184
  %228 = vmatprep.subr.mxu0 0.0
  %229 = vmatpush1.xpose.msra.mxu0 %v181
  %230 = vmatprep.subr.mxu0 0.0
  %231 = vmatpush1.xpose.msra.mxu0 %v178
  %232 = vmatprep.subr.mxu0 0.0
  %233 = vmatpush1.xpose.msra.mxu0 %v175
  %234 = vmatprep.subr.mxu0 0.0
  %235 = vmatpush1.xpose.msra.mxu0 %v172
  %236 = vmatprep.subr.mxu0 0.0
  %237 = vmatpush1.xpose.msra.mxu0 %v169
  %238 = vmatprep.subr.mxu0 0.0
  %239 = vmatpush1.xpose.msra.mxu0 %v166
  %240 = vmatprep.subr.mxu0 0.0
  %241 = vmatpush1.xpose.msra.mxu0 %v163
  %242 = vmatprep.subr.mxu0 0.0
  %243 = vmatpush2.xpose.msra.mxu0 0.0
  %244 = vmatprep.subr.mxu0 0.0
  %245 = vmatpush2.xpose.msra.mxu0 0.0
  %246 = vmatprep.subr.mxu0 0.0
  %247 = vmatpush2.xpose.msra.mxu0 0.0
  %248 = vmatprep.subr.mxu0 0.0
  %249 = vmatpush2.xpose.msra.mxu0 0.0
  %250 = vmatprep.subr.mxu0 0.0
  %251 = vmatpush2.xpose.msra.mxu0 0.0
  %252 = vmatprep.subr.mxu0 0.0
  %253 = vmatpush2.xpose.msra.mxu0 0.0
  %254 = vmatprep.subr.mxu0 0.0
  %255 = vmatpush2.xpose.msra.mxu0 0.0
  %256 = vmatprep.subr.mxu0 0.0
  %257 = vmatpush2.xpose.msra.mxu0 0.0
  %258 = vmatprep.subr.mxu0 0.0
  %259 = vmatpush2.xpose.msra.mxu0 0.0
  %260 = vmatprep.subr.mxu0 0.0
  %261 = vmatpush2.xpose.msra.mxu0 0.0
  %262 = vmatprep.subr.mxu0 0.0
  %263 = vmatpush2.xpose.msra.mxu0 0.0
  %264 = vmatprep.subr.mxu0 0.0
  %265 = vmatpush2.xpose.msra.mxu0 0.0
  %266 = vmatprep.subr.mxu0 0.0
  %267 = vmatpush2.xpose.msra.mxu0 0.0
  %268 = vmatprep.subr.mxu0 0.0
  %269 = vmatpush2.xpose.msra.mxu0 0.0
  %270 = vmatprep.subr.mxu0 0.0
  %271 = vmatpush2.xpose.msra.mxu0 0.0
  %272 = vmatprep.subr.mxu0 0.0
  %273 = vmatpush2.xpose.msra.mxu0 0.0
  %274 = vmatprep.mubr.f32.mxu0 0.0
  %275 = vmatmul.mubr.f32.gmra.mxu0 %v160
  %v276 = vpop.f32.mrf.mxu0
  %v277 = vadd.f32 %v156, %v276
  %v278 = vpop.f32.mrf.mxu0
  %279 = vdwg.mxu0
  %280 = vst [vmem:[%s5] sm:$0xff] %v277
  // Predicated region
  $region22: #{rtp_mlp_forward.1} parent=0 // pred_check
    _
  $region23: #{rtp_mlp_forward.1} parent=0 // pred_check_branch
    %282 = sbr.rel (0) target = $region25
  $region24: #{rtp_mlp_forward.1} parent=0 // pred_region
    _
  $region25: #{rtp_mlp_forward.1} parent=0 // pred_fallthru
    _
  // Predicated region
  $region26: #{rtp_mlp_forward.1} parent=0 // pred_check
    _
  $region27: #{rtp_mlp_forward.1} parent=0 // pred_check_branch
    %284 = sbr.rel (0) target = $region29
  $region28: #{rtp_mlp_forward.1} parent=0 // pred_region
    _
  $region29: #{rtp_mlp_forward.1} parent=0 // pred_fallthru
    _

</llo_original>
